<compile_context>
chip_gen: v6e
topology: v6e:2x2x1
jax: 0.10.0
libtpu: 0.0.40
codegen_flags: <defaults>
</compile_context>

<pallas_src>
import functools

import jax
import jax.numpy as jnp
from jax import lax
from jax.experimental import pallas as pl
from jax.experimental.pallas import tpu as pltpu


def _round_up(x, m):
    return ((x + m - 1) // m) * m


def _rnn_kernel(x_ref, wih_ref, whh_ref, b_ref, wfc_ref, bfc_ref,
                out_ref, xproj_ref):
    """One batch tile of the RNN forward.

    x_ref     : (T*bt, Ip)  zero-padded input slab, rows ordered t*bt + b
    wih_ref   : (Ip, Np)    W_ih^T (pre-transposed, zero-padded)
    whh_ref   : (Np, Np)    W_hh^T
    b_ref     : (1, Np)     b_ih + b_hh (pre-summed)
    wfc_ref   : (Np, Op)    W_fc^T
    bfc_ref   : (1, Op)     b_fc
    out_ref   : (bt, Op)    FC(h_T) for this batch tile
    xproj_ref : (T*bt, Np)  VMEM scratch for the hoisted input projection
    """
    tbt, _ = x_ref.shape
    bt, _ = out_ref.shape
    np_ = whh_ref.shape[1]
    n_steps = tbt // bt

    # Non-recurrent input projection for ALL steps in one MXU call, bias
    # folded in a single VPU pass, staged into VMEM scratch (not held live in
    # vregs across the recurrence).
    xproj_ref[...] = (
        jnp.dot(x_ref[...], wih_ref[...], preferred_element_type=jnp.float32)
        + b_ref[...])

    # Load W_hh^T once; loop-invariant so the MXU RHS push stays out of the
    # per-step critical path (weight-stationary).
    whh = whh_ref[...]

    def step(t, h):
        row = pl.multiple_of(t * bt, bt)
        x_t = xproj_ref[pl.ds(row, bt), :]
        return jnp.tanh(
            x_t + jnp.dot(h, whh, preferred_element_type=jnp.float32))

    h0 = jnp.zeros((bt, np_), jnp.float32)
    h = lax.fori_loop(0, n_steps, step, h0, unroll=True)

    # FC on the final hidden state (lane-dense output write).
    out_ref[...] = (
        jnp.dot(h, wfc_ref[...], preferred_element_type=jnp.float32)
        + bfc_ref[...]).astype(out_ref.dtype)


def prepare_params(params):
    """Pad/transpose the weights ONCE (call-invariant for inference).

    Returns (prepped_dict, n_outputs).
    """
    N, I = params["w_ih"].shape
    O = params["w_fc"].shape[0]
    Ip, Np, Op = _round_up(I, 128), _round_up(N, 128), _round_up(O, 128)
    f32 = jnp.float32
    prepped = {
        "w_ih_t": jnp.pad(params["w_ih"].astype(f32).T,
                          ((0, Ip - I), (0, Np - N))),
        "w_hh_t": jnp.pad(params["w_hh"].astype(f32).T,
                          ((0, Np - N), (0, Np - N))),
        "w_fc_t": jnp.pad(params["w_fc"].astype(f32).T,
                          ((0, Np - N), (0, Op - O))),
        "b_rnn": jnp.pad((params["b_ih"] + params["b_hh"]).astype(f32),
                         (0, Np - N)).reshape(1, Np),
        "b_fc": jnp.pad(params["b_fc"].astype(f32),
                        (0, Op - O)).reshape(1, Op),
    }
    return prepped, O


@functools.partial(jax.jit, static_argnames=("n_outputs", "batch_tile"))
def image_rnn_forward(X, w_ih_t, w_hh_t, b_rnn, w_fc_t, b_fc, *,
                      n_outputs, batch_tile=256):
    """Mirrors ImageRNN.forward: time-major RNN with h_0 = 0, FC on h_T."""
    B, T, I = X.shape
    Ip, Np = w_ih_t.shape
    Op = w_fc_t.shape[1]
    f32 = jnp.float32

    # Batch tile: at least 8 sublanes; up to `batch_tile` rows so the MXU sees
    # tall LHS tiles at real batch sizes (~128 rows on v5e, ~256 on v6e/v7x).
    bt = min(_round_up(max(B, 8), 8), batch_tile)
    Bp = _round_up(max(B, 8), bt)
    nb = Bp // bt

    # Per-call input relayout (the ONLY per-call prep):
    #   (B, T, I) -> zero-pad -> (nb, T*bt, Ip), rows within a tile ordered
    #   t*bt + b so the kernel slices time step t with pl.ds(t*bt, bt).
    Xp = jnp.pad(X.astype(f32), ((0, Bp - B), (0, 0), (0, Ip - I)))
    Xp = Xp.reshape(nb, bt, T, Ip).transpose(0, 2, 1, 3).reshape(nb, T * bt, Ip)

    # Advisory cost model for XLA scheduling around the custom call.
    flops = 2 * T * Bp * Np * (Ip + Np) + 2 * Bp * Np * Op
    transcendentals = T * Bp * Np
    bytes_accessed = 4 * (nb * T * bt * Ip + Ip * Np + Np * Np + Np
                          + Np * Op + Op + Bp * Op)
    cost = pl.CostEstimate(flops=flops, transcendentals=transcendentals,
                           bytes_accessed=bytes_accessed)

    # Per-core working set (input block + weights + scratch + out), doubled
    # for pipeline buffers, capped at v7x's 64 MiB physical VMEM.
    block_bytes = 4 * (T * bt * Ip + Ip * Np + Np * Np + Np + Np * Op + Op
                       + T * bt * Np + bt * Op)
    vmem_limit = int(min(max(2 * block_bytes + (2 << 20), 8 << 20), 64 << 20))

    grid_spec = pltpu.PrefetchScalarGridSpec(
        num_scalar_prefetch=0,
        grid=(nb,),
        in_specs=[
            # Per-tile input slab; leading grid dim squeezed away.
            pl.BlockSpec((None, T * bt, Ip), lambda i: (i, 0, 0)),
            # Weights/biases: same block every iteration -> stay resident.
            pl.BlockSpec((Ip, Np), lambda i: (0, 0)),
            pl.BlockSpec((Np, Np), lambda i: (0, 0)),
            pl.BlockSpec((1, Np), lambda i: (0, 0)),
            pl.BlockSpec((Np, Op), lambda i: (0, 0)),
            pl.BlockSpec((1, Op), lambda i: (0, 0)),
        ],
        out_specs=pl.BlockSpec((bt, Op), lambda i: (i, 0)),
        scratch_shapes=[pltpu.VMEM((T * bt, Np), jnp.float32)],
    )

    out_pad = pl.pallas_call(
        _rnn_kernel,
        out_shape=jax.ShapeDtypeStruct((Bp, Op), f32),
        grid_spec=grid_spec,
        compiler_params=pltpu.CompilerParams(
            dimension_semantics=("parallel",),
            vmem_limit_bytes=vmem_limit),
        cost_estimate=cost,
    )(Xp, w_ih_t, w_hh_t, b_rnn, w_fc_t, b_fc)

    return out_pad[:B, :n_outputs]


def _reference_forward(X, params):
    """Pure-JAX reference mirroring PyTorch ImageRNN semantics."""
    X_tm = jnp.transpose(X, (1, 0, 2))
    B = X_tm.shape[1]
    N = params["w_hh"].shape[0]
    h = jnp.zeros((B, N), jnp.float32)
    for t in range(X_tm.shape[0]):
        h = jnp.tanh(X_tm[t] @ params["w_ih"].T + params["b_ih"]
                     + h @ params["w_hh"].T + params["b_hh"])
    return h @ params["w_fc"].T + params["b_fc"]


if __name__ == "__main__":
    # Small shapes consistent with the module:
    # batch=2, n_steps=8, n_inputs=16, n_neurons=32, n_outputs=10
    B, T, I, N, O = 2, 8, 16, 32, 10

    key = jax.random.PRNGKey(0)
    ks = jax.random.split(key, 7)
    scale = 0.1
    params = {
        "w_ih": scale * jax.random.normal(ks[0], (N, I), jnp.float32),
        "w_hh": scale * jax.random.normal(ks[1], (N, N), jnp.float32),
        "b_ih": scale * jax.random.normal(ks[2], (N,), jnp.float32),
        "b_hh": scale * jax.random.normal(ks[3], (N,), jnp.float32),
        "w_fc": scale * jax.random.normal(ks[4], (O, N), jnp.float32),
        "b_fc": scale * jax.random.normal(ks[5], (O,), jnp.float32),
    }
    X = jax.random.normal(ks[6], (B, T, I), jnp.float32)

    # One-time (call-invariant) weight prep; per-call path only relays out X.
    prepped, n_out = prepare_params(params)
    prepped = jax.tree_util.tree_map(jax.block_until_ready, prepped)

    out = image_rnn_forward(X, prepped["w_ih_t"], prepped["w_hh_t"],
                            prepped["b_rnn"], prepped["w_fc_t"],
                            prepped["b_fc"], n_outputs=n_out)
    out = jax.block_until_ready(out)

    ref = _reference_forward(X, params)
    assert out.shape == (B, O)
    assert jnp.allclose(out, ref, atol=1e-5, rtol=1e-5), "mismatch vs reference"

    print("KERNEL_OK")
</pallas_src>

<mosaic_0001>
module attributes {stable_mosaic.version = 11 : i64} {
  func.func @_rnn_kernel(%arg0: i32, %arg1: memref<1x64x128xf32, #tpu.memory_space<vmem>>, %arg2: memref<128x128xf32, #tpu.memory_space<vmem>>, %arg3: memref<128x128xf32, #tpu.memory_space<vmem>>, %arg4: memref<1x128xf32, #tpu.memory_space<vmem>>, %arg5: memref<128x128xf32, #tpu.memory_space<vmem>>, %arg6: memref<1x128xf32, #tpu.memory_space<vmem>>, %arg7: memref<8x128xf32, #tpu.memory_space<vmem>>, %arg8: memref<64x128xf32, #tpu.memory_space<vmem>>) attributes {dimension_semantics = [#tpu.dimension_semantics<parallel>], iteration_bounds = array<i64: 1>, scalar_prefetch = 0 : i64, scratch_operands = 1 : i64, tpu.core_type = #tpu.core_type<tc>, window_params = [{transform_indices = @transform_0, window_bounds = array<i64: 1, 64, 128>}, {pipeline_mode = #tpu.pipeline_mode<synchronous>, transform_indices = @transform_1, window_bounds = array<i64: 128, 128>}, {pipeline_mode = #tpu.pipeline_mode<synchronous>, transform_indices = @transform_2, window_bounds = array<i64: 128, 128>}, {pipeline_mode = #tpu.pipeline_mode<synchronous>, transform_indices = @transform_3, window_bounds = array<i64: 1, 128>}, {pipeline_mode = #tpu.pipeline_mode<synchronous>, transform_indices = @transform_4, window_bounds = array<i64: 128, 128>}, {pipeline_mode = #tpu.pipeline_mode<synchronous>, transform_indices = @transform_5, window_bounds = array<i64: 1, 128>}, {transform_indices = @transform_6, window_bounds = array<i64: 8, 128>}]} {
    %c0 = arith.constant 0 : index
    %c0_0 = arith.constant 0 : index
    %c0_1 = arith.constant 0 : index
    %0 = vector.load %arg1[%c0, %c0_0, %c0_1] : memref<1x64x128xf32, #tpu.memory_space<vmem>>, vector<1x64x128xf32>
    %1 = vector.shape_cast %0 : vector<1x64x128xf32> to vector<64x128xf32>
    %c0_2 = arith.constant 0 : index
    %c0_3 = arith.constant 0 : index
    %2 = vector.load %arg2[%c0_2, %c0_3] : memref<128x128xf32, #tpu.memory_space<vmem>>, vector<128x128xf32>
    %cst = arith.constant dense<0.000000e+00> : vector<64x128xf32>
    %3 = tpu.matmul %1, %2, %cst {dimension_numbers = #tpu.dot_dimension_numbers<[1], [0], [0], [1], [0, 0, 1, 1], [], []>} : vector<64x128xf32>, vector<128x128xf32>, vector<64x128xf32> -> vector<64x128xf32>
    %c0_4 = arith.constant 0 : index
    %c0_5 = arith.constant 0 : index
    %4 = vector.load %arg4[%c0_4, %c0_5] : memref<1x128xf32, #tpu.memory_space<vmem>>, vector<1x128xf32>
    %5 = vector.broadcast %4 : vector<1x128xf32> to vector<64x128xf32>
    %6 = arith.addf %3, %5 : vector<64x128xf32>
    %c0_6 = arith.constant 0 : index
    %c0_7 = arith.constant 0 : index
    %7 = vector.load %arg8[%c0_6, %c0_7] : memref<64x128xf32, #tpu.memory_space<vmem>>, vector<64x128xf32>
    tpu.vector_store %arg8[%c0_6, %c0_7], %6 {strides = array<i32>} : memref<64x128xf32, #tpu.memory_space<vmem>>, vector<64x128xf32>,
    %c0_8 = arith.constant 0 : index
    %c0_9 = arith.constant 0 : index
    %8 = vector.load %arg3[%c0_8, %c0_9] : memref<128x128xf32, #tpu.memory_space<vmem>>, vector<128x128xf32>
    %cst_10 = arith.constant 0.000000e+00 : f32
    %9 = vector.broadcast %cst_10 : f32 to vector<8x128xf32>
    %c0_i32 = arith.constant 0 : i32
    %c8_i32 = arith.constant 8 : i32
    %10 = arith.muli %c0_i32, %c8_i32 : i32
    %11 = tpu.assume_multiple %10, 8 : i32
    %12 = arith.index_cast %11 : i32 to index
    %c0_11 = arith.constant 0 : index
    %13 = vector.load %arg8[%12, %c0_11] : memref<64x128xf32, #tpu.memory_space<vmem>>, vector<8x128xf32>
    %cst_12 = arith.constant dense<0.000000e+00> : vector<8x128xf32>
    %14 = tpu.matmul %9, %8, %cst_12 {dimension_numbers = #tpu.dot_dimension_numbers<[1], [0], [0], [1], [0, 0, 1, 1], [], []>} : vector<8x128xf32>, vector<128x128xf32>, vector<8x128xf32> -> vector<8x128xf32>
    %15 = arith.addf %13, %14 : vector<8x128xf32>
    %16 = math.tanh %15 : vector<8x128xf32>
    %c1_i32 = arith.constant 1 : i32
    %c8_i32_13 = arith.constant 8 : i32
    %17 = arith.muli %c1_i32, %c8_i32_13 : i32
    %18 = tpu.assume_multiple %17, 8 : i32
    %19 = arith.index_cast %18 : i32 to index
    %c0_14 = arith.constant 0 : index
    %20 = vector.load %arg8[%19, %c0_14] : memref<64x128xf32, #tpu.memory_space<vmem>>, vector<8x128xf32>
    %cst_15 = arith.constant dense<0.000000e+00> : vector<8x128xf32>
    %21 = tpu.matmul %16, %8, %cst_15 {dimension_numbers = #tpu.dot_dimension_numbers<[1], [0], [0], [1], [0, 0, 1, 1], [], []>} : vector<8x128xf32>, vector<128x128xf32>, vector<8x128xf32> -> vector<8x128xf32>
    %22 = arith.addf %20, %21 : vector<8x128xf32>
    %23 = math.tanh %22 : vector<8x128xf32>
    %c2_i32 = arith.constant 2 : i32
    %c8_i32_16 = arith.constant 8 : i32
    %24 = arith.muli %c2_i32, %c8_i32_16 : i32
    %25 = tpu.assume_multiple %24, 8 : i32
    %26 = arith.index_cast %25 : i32 to index
    %c0_17 = arith.constant 0 : index
    %27 = vector.load %arg8[%26, %c0_17] : memref<64x128xf32, #tpu.memory_space<vmem>>, vector<8x128xf32>
    %cst_18 = arith.constant dense<0.000000e+00> : vector<8x128xf32>
    %28 = tpu.matmul %23, %8, %cst_18 {dimension_numbers = #tpu.dot_dimension_numbers<[1], [0], [0], [1], [0, 0, 1, 1], [], []>} : vector<8x128xf32>, vector<128x128xf32>, vector<8x128xf32> -> vector<8x128xf32>
    %29 = arith.addf %27, %28 : vector<8x128xf32>
    %30 = math.tanh %29 : vector<8x128xf32>
    %c3_i32 = arith.constant 3 : i32
    %c8_i32_19 = arith.constant 8 : i32
    %31 = arith.muli %c3_i32, %c8_i32_19 : i32
    %32 = tpu.assume_multiple %31, 8 : i32
    %33 = arith.index_cast %32 : i32 to index
    %c0_20 = arith.constant 0 : index
    %34 = vector.load %arg8[%33, %c0_20] : memref<64x128xf32, #tpu.memory_space<vmem>>, vector<8x128xf32>
    %cst_21 = arith.constant dense<0.000000e+00> : vector<8x128xf32>
    %35 = tpu.matmul %30, %8, %cst_21 {dimension_numbers = #tpu.dot_dimension_numbers<[1], [0], [0], [1], [0, 0, 1, 1], [], []>} : vector<8x128xf32>, vector<128x128xf32>, vector<8x128xf32> -> vector<8x128xf32>
    %36 = arith.addf %34, %35 : vector<8x128xf32>
    %37 = math.tanh %36 : vector<8x128xf32>
    %c4_i32 = arith.constant 4 : i32
    %c8_i32_22 = arith.constant 8 : i32
    %38 = arith.muli %c4_i32, %c8_i32_22 : i32
    %39 = tpu.assume_multiple %38, 8 : i32
    %40 = arith.index_cast %39 : i32 to index
    %c0_23 = arith.constant 0 : index
    %41 = vector.load %arg8[%40, %c0_23] : memref<64x128xf32, #tpu.memory_space<vmem>>, vector<8x128xf32>
    %cst_24 = arith.constant dense<0.000000e+00> : vector<8x128xf32>
    %42 = tpu.matmul %37, %8, %cst_24 {dimension_numbers = #tpu.dot_dimension_numbers<[1], [0], [0], [1], [0, 0, 1, 1], [], []>} : vector<8x128xf32>, vector<128x128xf32>, vector<8x128xf32> -> vector<8x128xf32>
    %43 = arith.addf %41, %42 : vector<8x128xf32>
    %44 = math.tanh %43 : vector<8x128xf32>
    %c5_i32 = arith.constant 5 : i32
    %c8_i32_25 = arith.constant 8 : i32
    %45 = arith.muli %c5_i32, %c8_i32_25 : i32
    %46 = tpu.assume_multiple %45, 8 : i32
    %47 = arith.index_cast %46 : i32 to index
    %c0_26 = arith.constant 0 : index
    %48 = vector.load %arg8[%47, %c0_26] : memref<64x128xf32, #tpu.memory_space<vmem>>, vector<8x128xf32>
    %cst_27 = arith.constant dense<0.000000e+00> : vector<8x128xf32>
    %49 = tpu.matmul %44, %8, %cst_27 {dimension_numbers = #tpu.dot_dimension_numbers<[1], [0], [0], [1], [0, 0, 1, 1], [], []>} : vector<8x128xf32>, vector<128x128xf32>, vector<8x128xf32> -> vector<8x128xf32>
    %50 = arith.addf %48, %49 : vector<8x128xf32>
    %51 = math.tanh %50 : vector<8x128xf32>
    %c6_i32 = arith.constant 6 : i32
    %c8_i32_28 = arith.constant 8 : i32
    %52 = arith.muli %c6_i32, %c8_i32_28 : i32
    %53 = tpu.assume_multiple %52, 8 : i32
    %54 = arith.index_cast %53 : i32 to index
    %c0_29 = arith.constant 0 : index
    %55 = vector.load %arg8[%54, %c0_29] : memref<64x128xf32, #tpu.memory_space<vmem>>, vector<8x128xf32>
    %cst_30 = arith.constant dense<0.000000e+00> : vector<8x128xf32>
    %56 = tpu.matmul %51, %8, %cst_30 {dimension_numbers = #tpu.dot_dimension_numbers<[1], [0], [0], [1], [0, 0, 1, 1], [], []>} : vector<8x128xf32>, vector<128x128xf32>, vector<8x128xf32> -> vector<8x128xf32>
    %57 = arith.addf %55, %56 : vector<8x128xf32>
    %58 = math.tanh %57 : vector<8x128xf32>
    %c7_i32 = arith.constant 7 : i32
    %c8_i32_31 = arith.constant 8 : i32
    %59 = arith.muli %c7_i32, %c8_i32_31 : i32
    %60 = tpu.assume_multiple %59, 8 : i32
    %61 = arith.index_cast %60 : i32 to index
    %c0_32 = arith.constant 0 : index
    %62 = vector.load %arg8[%61, %c0_32] : memref<64x128xf32, #tpu.memory_space<vmem>>, vector<8x128xf32>
    %cst_33 = arith.constant dense<0.000000e+00> : vector<8x128xf32>
    %63 = tpu.matmul %58, %8, %cst_33 {dimension_numbers = #tpu.dot_dimension_numbers<[1], [0], [0], [1], [0, 0, 1, 1], [], []>} : vector<8x128xf32>, vector<128x128xf32>, vector<8x128xf32> -> vector<8x128xf32>
    %64 = arith.addf %62, %63 : vector<8x128xf32>
    %65 = math.tanh %64 : vector<8x128xf32>
    %c8_i32_34 = arith.constant 8 : i32
    %c0_35 = arith.constant 0 : index
    %c0_36 = arith.constant 0 : index
    %66 = vector.load %arg5[%c0_35, %c0_36] : memref<128x128xf32, #tpu.memory_space<vmem>>, vector<128x128xf32>
    %cst_37 = arith.constant dense<0.000000e+00> : vector<8x128xf32>
    %67 = tpu.matmul %65, %66, %cst_37 {dimension_numbers = #tpu.dot_dimension_numbers<[1], [0], [0], [1], [0, 0, 1, 1], [], []>} : vector<8x128xf32>, vector<128x128xf32>, vector<8x128xf32> -> vector<8x128xf32>
    %c0_38 = arith.constant 0 : index
    %c0_39 = arith.constant 0 : index
    %68 = vector.load %arg6[%c0_38, %c0_39] : memref<1x128xf32, #tpu.memory_space<vmem>>, vector<1x128xf32>
    %69 = vector.broadcast %68 : vector<1x128xf32> to vector<8x128xf32>
    %70 = arith.addf %67, %69 : vector<8x128xf32>
    %c0_40 = arith.constant 0 : index
    %c0_41 = arith.constant 0 : index
    %71 = vector.load %arg7[%c0_40, %c0_41] : memref<8x128xf32, #tpu.memory_space<vmem>>, vector<8x128xf32>
    tpu.vector_store %arg7[%c0_40, %c0_41], %70 {strides = array<i32>} : memref<8x128xf32, #tpu.memory_space<vmem>>, vector<8x128xf32>,
    return
  }
  func.func @transform_0(%arg0: i32) -> (i32, i32, i32) {
    %c0_i32 = arith.constant 0 : i32
    %c0_i32_0 = arith.constant 0 : i32
    %c0_i32_1 = arith.constant 0 : i32
    return %arg0, %c0_i32, %c0_i32_0 : i32, i32, i32
  }
  func.func @transform_1(%arg0: i32) -> (i32, i32) {
    %c0_i32 = arith.constant 0 : i32
    %c0_i32_0 = arith.constant 0 : i32
    %c0_i32_1 = arith.constant 0 : i32
    return %c0_i32, %c0_i32_0 : i32, i32
  }
  func.func @transform_2(%arg0: i32) -> (i32, i32) {
    %c0_i32 = arith.constant 0 : i32
    %c0_i32_0 = arith.constant 0 : i32
    %c0_i32_1 = arith.constant 0 : i32
    return %c0_i32, %c0_i32_0 : i32, i32
  }
  func.func @transform_3(%arg0: i32) -> (i32, i32) {
    %c0_i32 = arith.constant 0 : i32
    %c0_i32_0 = arith.constant 0 : i32
    %c0_i32_1 = arith.constant 0 : i32
    return %c0_i32, %c0_i32_0 : i32, i32
  }
  func.func @transform_4(%arg0: i32) -> (i32, i32) {
    %c0_i32 = arith.constant 0 : i32
    %c0_i32_0 = arith.constant 0 : i32
    %c0_i32_1 = arith.constant 0 : i32
    return %c0_i32, %c0_i32_0 : i32, i32
  }
  func.func @transform_5(%arg0: i32) -> (i32, i32) {
    %c0_i32 = arith.constant 0 : i32
    %c0_i32_0 = arith.constant 0 : i32
    %c0_i32_1 = arith.constant 0 : i32
    return %c0_i32, %c0_i32_0 : i32, i32
  }
  func.func @transform_6(%arg0: i32) -> (i32, i32) {
    %c0_i32 = arith.constant 0 : i32
    %c0_i32_0 = arith.constant 0 : i32
    return %arg0, %c0_i32 : i32, i32
  }
}

</mosaic_0001>

<llo_original>
// kernel: image_rnn_forward.1
$region0: #{image_rnn_forward.1}
  #allocation0 [shape = 'u32[]', space=smem, size = 0x4, offset = 0x4, fixed_abs, tag = 'smem constant byte address 0x4 - core index']
  #allocation1 [shape = 'u32[144,128]{1,0:T(1,128)}', space=vmem, size = 0x12000, scoped, tag = 'internal scratch']
  #allocation2 [shape = 'f32[64,128]{1,0:T(8,128)}', space=vmem, size = 0x8000, scoped, tag = 'scratch operand']
  %s0 = inlined_call_operand.vmem [shape: f32[1,64,128], index: 0, kind: input, shape index: {}]
  %s1 = inlined_call_operand.vmem [shape: f32[128,128], index: 1, kind: input, shape index: {}]
  %s2 = inlined_call_operand.hbm [shape: f32[128,128], index: 2, kind: input, shape index: {}]
  %s3 = inlined_call_operand.vmem [shape: f32[1,128], index: 3, kind: input, shape index: {}]
  %s4 = inlined_call_operand.hbm [shape: f32[128,128], index: 4, kind: input, shape index: {}]
  %s5 = inlined_call_operand.vmem [shape: f32[1,128], index: 5, kind: input, shape index: {}]
  %s6 = inlined_call_operand.vmem [shape: f32[8,128], index: 6, kind: output, shape index: {}]
  %s7 = sld [smem:[#allocation0]]
  $region42: #{image_rnn_forward.1} parent=0
    _
  %s9 = ssub.s32 1, %s7
  %s10 = scalar_select 0, %s9, %s7
  $region1: #{image_rnn_forward.1} parent=0
    #allocation3 [shape = 'u8[65536]{0}', space=vmem, size = 0x10000, scoped, tag = 'input window, operand 2, single buffered']
    #allocation4 [shape = 's32[1]{0}', space=sflag, size = 0x4, scoped, tag = 'scoped memory for image_rnn_forward.1']
    #allocation5 [shape = 'u8[65536]{0}', space=vmem, size = 0x10000, scoped, tag = 'input window, operand 4, single buffered']
    #allocation6 [shape = 's32[1]{0}', space=sflag, size = 0x4, scoped, tag = 'scoped memory for image_rnn_forward.1']
    %11 = vsyncpa [#allocation4], 0
    %12 = vsyncpa [#allocation6], 0
    // Predicated region
    $region2: #{image_rnn_forward.1} parent=1 // pred_check
      _
    $region3: #{image_rnn_forward.1} parent=1 // pred_check_branch
      %14 = sbr.rel (0) target = $region5
    $region4: #{image_rnn_forward.1} parent=1 // pred_region
      _
    $region5: #{image_rnn_forward.1} parent=1 // pred_fallthru
      _
    // Predicated region
    $region6: #{image_rnn_forward.1} parent=1 // pred_check
      _
    $region7: #{image_rnn_forward.1} parent=1 // pred_check_branch
      %16 = sbr.rel (0) target = $region9
    $region8: #{image_rnn_forward.1} parent=1 // pred_region
      _
    $region9: #{image_rnn_forward.1} parent=1 // pred_fallthru
      _
    // Predicated region
    $region10: #{image_rnn_forward.1} parent=1 // pred_check
      _
    $region11: #{image_rnn_forward.1} parent=1 // pred_check_branch
      %18 = sbr.rel (0) target = $region13
    $region12: #{image_rnn_forward.1} parent=1 // pred_region
      %s20 = ssub.s32 2048, 2048
      %21 = vsyncadd [#allocation4], %s20
      %s22 = sshll.u32 [#allocation3], 4
      %s23 = int_to_ptr.vmem [resolvable:$true] %s22
      %28 = dma.hbm_to_vmem [thread:$0]  %s2, 2048, %s23, [#allocation4], 128, 128, 8
    $region13: #{image_rnn_forward.1} parent=1 // pred_fallthru
      _
    // Predicated region
    $region14: #{image_rnn_forward.1} parent=1 // pred_check
      _
    $region15: #{image_rnn_forward.1} parent=1 // pred_check_branch
      %30 = sbr.rel (0) target = $region17
    $region16: #{image_rnn_forward.1} parent=1 // pred_region
      _
    $region17: #{image_rnn_forward.1} parent=1 // pred_fallthru
      _
    // Predicated region
    $region18: #{image_rnn_forward.1} parent=1 // pred_check
      _
    $region19: #{image_rnn_forward.1} parent=1 // pred_check_branch
      %32 = sbr.rel (0) target = $region21
    $region20: #{image_rnn_forward.1} parent=1 // pred_region
      %s34 = ssub.s32 2048, 2048
      %35 = vsyncadd [#allocation6], %s34
      %s36 = sshll.u32 [#allocation5], 4
      %s37 = int_to_ptr.vmem [resolvable:$true] %s36
      %42 = dma.hbm_to_vmem [thread:$0]  %s4, 2048, %s37, [#allocation6], 128, 128, 8
    $region21: #{image_rnn_forward.1} parent=1 // pred_fallthru
      _
    // Predicated region
    $region22: #{image_rnn_forward.1} parent=1 // pred_check
      _
    $region23: #{image_rnn_forward.1} parent=1 // pred_check_branch
      %44 = sbr.rel (0) target = $region25
    $region24: #{image_rnn_forward.1} parent=1 // pred_region
      _
    $region25: #{image_rnn_forward.1} parent=1 // pred_fallthru
      _
    // Predicated region
    $region26: #{image_rnn_forward.1} parent=1 // pred_check
      _
    $region27: #{image_rnn_forward.1} parent=1 // pred_check_branch
      %46 = sbr.rel (0) target = $region29
    $region28: #{image_rnn_forward.1} parent=1 // pred_region
      %47 = dma.done [#allocation4], 2048
    $region29: #{image_rnn_forward.1} parent=1 // pred_fallthru
      _
    // Predicated region
    $region30: #{image_rnn_forward.1} parent=1 // pred_check
      _
    $region31: #{image_rnn_forward.1} parent=1 // pred_check_branch
      %49 = sbr.rel (0) target = $region33
    $region32: #{image_rnn_forward.1} parent=1 // pred_region
      %50 = dma.done [#allocation6], 2048
    $region33: #{image_rnn_forward.1} parent=1 // pred_fallthru
      _
    %v51 = vld [vmem:[%s0] sm:$0xff]
    %v52 = vld [vmem:[%s0 + $0x8] sm:$0xff]
    %v53 = vld [vmem:[%s0 + $0x10] sm:$0xff]
    %v54 = vld [vmem:[%s0 + $0x18] sm:$0xff]
    %v55 = vld [vmem:[%s0 + $0x20] sm:$0xff]
    %v56 = vld [vmem:[%s0 + $0x28] sm:$0xff]
    %v57 = vld [vmem:[%s0 + $0x30] sm:$0xff]
    %v58 = vld [vmem:[%s0 + $0x38] sm:$0xff]
    %v59 = vld [vmem:[%s1] sm:$0xff]
    %v60 = vld [vmem:[%s1 + $0x8] sm:$0xff]
    %v61 = vld [vmem:[%s1 + $0x10] sm:$0xff]
    %v62 = vld [vmem:[%s1 + $0x18] sm:$0xff]
    %v63 = vld [vmem:[%s1 + $0x20] sm:$0xff]
    %v64 = vld [vmem:[%s1 + $0x28] sm:$0xff]
    %v65 = vld [vmem:[%s1 + $0x30] sm:$0xff]
    %v66 = vld [vmem:[%s1 + $0x38] sm:$0xff]
    %v67 = vld [vmem:[%s1 + $0x40] sm:$0xff]
    %v68 = vld [vmem:[%s1 + $0x48] sm:$0xff]
    %v69 = vld [vmem:[%s1 + $0x50] sm:$0xff]
    %v70 = vld [vmem:[%s1 + $0x58] sm:$0xff]
    %v71 = vld [vmem:[%s1 + $0x60] sm:$0xff]
    %v72 = vld [vmem:[%s1 + $0x68] sm:$0xff]
    %v73 = vld [vmem:[%s1 + $0x70] sm:$0xff]
    %v74 = vld [vmem:[%s1 + $0x78] sm:$0xff]
    %v75 = vld [vmem:[%s3] sm:$0x1]
    %v77 = vlaneseq
    %v78 = vshrl.u32 %v77, 7
    %v79 = vsub.s32 0, %v78
    %v80 = vrot.slane %v75, %v79
    %82 = vmatprep.subr.mxu0 0.0
    %83 = vmatpush1.msra.mxu0 %v74
    %84 = vmatprep.subr.mxu0 0.0
    %85 = vmatpush1.msra.mxu0 %v73
    %86 = vmatprep.subr.mxu0 0.0
    %87 = vmatpush1.msra.mxu0 %v72
    %88 = vmatprep.subr.mxu0 0.0
    %89 = vmatpush1.msra.mxu0 %v71
    %90 = vmatprep.subr.mxu0 0.0
    %91 = vmatpush1.msra.mxu0 %v70
    %92 = vmatprep.subr.mxu0 0.0
    %93 = vmatpush1.msra.mxu0 %v69
    %94 = vmatprep.subr.mxu0 0.0
    %95 = vmatpush1.msra.mxu0 %v68
    %96 = vmatprep.subr.mxu0 0.0
    %97 = vmatpush1.msra.mxu0 %v67
    %98 = vmatprep.subr.mxu0 0.0
    %99 = vmatpush1.msra.mxu0 %v66
    %100 = vmatprep.subr.mxu0 0.0
    %101 = vmatpush1.msra.mxu0 %v65
    %102 = vmatprep.subr.mxu0 0.0
    %103 = vmatpush1.msra.mxu0 %v64
    %104 = vmatprep.subr.mxu0 0.0
    %105 = vmatpush1.msra.mxu0 %v63
    %106 = vmatprep.subr.mxu0 0.0
    %107 = vmatpush1.msra.mxu0 %v62
    %108 = vmatprep.subr.mxu0 0.0
    %109 = vmatpush1.msra.mxu0 %v61
    %110 = vmatprep.subr.mxu0 0.0
    %111 = vmatpush1.msra.mxu0 %v60
    %112 = vmatprep.subr.mxu0 0.0
    %113 = vmatpush1.msra.mxu0 %v59
    %114 = vmatprep.subr.mxu0 0.0
    %115 = vmatpush2.msra.mxu0 0.0
    %116 = vmatprep.subr.mxu0 0.0
    %117 = vmatpush2.msra.mxu0 0.0
    %118 = vmatprep.subr.mxu0 0.0
    %119 = vmatpush2.msra.mxu0 0.0
    %120 = vmatprep.subr.mxu0 0.0
    %121 = vmatpush2.msra.mxu0 0.0
    %122 = vmatprep.subr.mxu0 0.0
    %123 = vmatpush2.msra.mxu0 0.0
    %124 = vmatprep.subr.mxu0 0.0
    %125 = vmatpush2.msra.mxu0 0.0
    %126 = vmatprep.subr.mxu0 0.0
    %127 = vmatpush2.msra.mxu0 0.0
    %128 = vmatprep.subr.mxu0 0.0
    %129 = vmatpush2.msra.mxu0 0.0
    %130 = vmatprep.subr.mxu0 0.0
    %131 = vmatpush2.msra.mxu0 0.0
    %132 = vmatprep.subr.mxu0 0.0
    %133 = vmatpush2.msra.mxu0 0.0
    %134 = vmatprep.subr.mxu0 0.0
    %135 = vmatpush2.msra.mxu0 0.0
    %136 = vmatprep.subr.mxu0 0.0
    %137 = vmatpush2.msra.mxu0 0.0
    %138 = vmatprep.subr.mxu0 0.0
    %139 = vmatpush2.msra.mxu0 0.0
    %140 = vmatprep.subr.mxu0 0.0
    %141 = vmatpush2.msra.mxu0 0.0
    %142 = vmatprep.subr.mxu0 0.0
    %143 = vmatpush2.msra.mxu0 0.0
    %144 = vmatprep.subr.mxu0 0.0
    %145 = vmatpush2.msra.mxu0 0.0
    %146 = vmatprep.mubr.f32.mxu0 0.0
    %147 = vmatmul.mubr.f32.gmra.mxu0 %v51
    %v148 = vpop.f32.mrf.mxu0
    %v149 = vadd.f32 %v80, %v148
    %v150 = vpop.f32.mrf.mxu0
    %151 = vmatprep.mubr.f32.mxu0 0.0
    %152 = vmatmul.mubr.f32.gmra.mxu0 %v52
    %v153 = vpop.f32.mrf.mxu0
    %v154 = vadd.f32 %v80, %v153
    %v155 = vpop.f32.mrf.mxu0
    %156 = vmatprep.mubr.f32.mxu0 0.0
    %157 = vmatmul.mubr.f32.gmra.mxu0 %v53
    %v158 = vpop.f32.mrf.mxu0
    %v159 = vadd.f32 %v80, %v158
    %v160 = vpop.f32.mrf.mxu0
    %161 = vmatprep.mubr.f32.mxu0 0.0
    %162 = vmatmul.mubr.f32.gmra.mxu0 %v54
    %v163 = vpop.f32.mrf.mxu0
    %v164 = vadd.f32 %v80, %v163
    %v165 = vpop.f32.mrf.mxu0
    %166 = vmatprep.mubr.f32.mxu0 0.0
    %167 = vmatmul.mubr.f32.gmra.mxu0 %v55
    %v168 = vpop.f32.mrf.mxu0
    %v169 = vadd.f32 %v80, %v168
    %v170 = vpop.f32.mrf.mxu0
    %171 = vmatprep.mubr.f32.mxu0 0.0
    %172 = vmatmul.mubr.f32.gmra.mxu0 %v56
    %v173 = vpop.f32.mrf.mxu0
    %v174 = vadd.f32 %v80, %v173
    %v175 = vpop.f32.mrf.mxu0
    %176 = vmatprep.mubr.f32.mxu0 0.0
    %177 = vmatmul.mubr.f32.gmra.mxu0 %v57
    %v178 = vpop.f32.mrf.mxu0
    %v179 = vadd.f32 %v80, %v178
    %v180 = vpop.f32.mrf.mxu0
    %181 = vmatprep.mubr.f32.mxu0 0.0
    %182 = vmatmul.mubr.f32.gmra.mxu0 %v58
    %v183 = vpop.f32.mrf.mxu0
    %v184 = vadd.f32 %v80, %v183
    %v185 = vpop.f32.mrf.mxu0
    %186 = vdwg.mxu0
    %187 = vst [vmem:[#allocation2] sm:$0xff] %v149
    %188 = vst [vmem:[#allocation2 + $0x8] sm:$0xff] %v154
    %189 = vst [vmem:[#allocation2 + $0x10] sm:$0xff] %v159
    %190 = vst [vmem:[#allocation2 + $0x18] sm:$0xff] %v164
    %191 = vst [vmem:[#allocation2 + $0x20] sm:$0xff] %v169
    %192 = vst [vmem:[#allocation2 + $0x28] sm:$0xff] %v174
    %193 = vst [vmem:[#allocation2 + $0x30] sm:$0xff] %v179
    %194 = vst [vmem:[#allocation2 + $0x38] sm:$0xff] %v184
    %v195 = vld [vmem:[#allocation3] sm:$0xff]
    %v196 = vld [vmem:[#allocation3 + $0x8] sm:$0xff]
    %v197 = vld [vmem:[#allocation3 + $0x10] sm:$0xff]
    %v198 = vld [vmem:[#allocation3 + $0x18] sm:$0xff]
    %v199 = vld [vmem:[#allocation3 + $0x20] sm:$0xff]
    %v200 = vld [vmem:[#allocation3 + $0x28] sm:$0xff]
    %v201 = vld [vmem:[#allocation3 + $0x30] sm:$0xff]
    %v202 = vld [vmem:[#allocation3 + $0x38] sm:$0xff]
    %v203 = vld [vmem:[#allocation3 + $0x40] sm:$0xff]
    %v204 = vld [vmem:[#allocation3 + $0x48] sm:$0xff]
    %v205 = vld [vmem:[#allocation3 + $0x50] sm:$0xff]
    %v206 = vld [vmem:[#allocation3 + $0x58] sm:$0xff]
    %v207 = vld [vmem:[#allocation3 + $0x60] sm:$0xff]
    %v208 = vld [vmem:[#allocation3 + $0x68] sm:$0xff]
    %v209 = vld [vmem:[#allocation3 + $0x70] sm:$0xff]
    %v210 = vld [vmem:[#allocation3 + $0x78] sm:$0xff]
    %v211 = vld [vmem:[#allocation2] sm:$0xff]
    %212 = vmatprep.subr.mxu0 0.0
    %213 = vmatpush1.msra.mxu0 %v210
    %214 = vmatprep.subr.mxu0 0.0
    %215 = vmatpush1.msra.mxu0 %v209
    %216 = vmatprep.subr.mxu0 0.0
    %217 = vmatpush1.msra.mxu0 %v208
    %218 = vmatprep.subr.mxu0 0.0
    %219 = vmatpush1.msra.mxu0 %v207
    %220 = vmatprep.subr.mxu0 0.0
    %221 = vmatpush1.msra.mxu0 %v206
    %222 = vmatprep.subr.mxu0 0.0
    %223 = vmatpush1.msra.mxu0 %v205
    %224 = vmatprep.subr.mxu0 0.0
    %225 = vmatpush1.msra.mxu0 %v204
    %226 = vmatprep.subr.mxu0 0.0
    %227 = vmatpush1.msra.mxu0 %v203
    %228 = vmatprep.subr.mxu0 0.0
    %229 = vmatpush1.msra.mxu0 %v202
    %230 = vmatprep.subr.mxu0 0.0
    %231 = vmatpush1.msra.mxu0 %v201
    %232 = vmatprep.subr.mxu0 0.0
    %233 = vmatpush1.msra.mxu0 %v200
    %234 = vmatprep.subr.mxu0 0.0
    %235 = vmatpush1.msra.mxu0 %v199
    %236 = vmatprep.subr.mxu0 0.0
    %237 = vmatpush1.msra.mxu0 %v198
    %238 = vmatprep.subr.mxu0 0.0
    %239 = vmatpush1.msra.mxu0 %v197
    %240 = vmatprep.subr.mxu0 0.0
    %241 = vmatpush1.msra.mxu0 %v196
    %242 = vmatprep.subr.mxu0 0.0
    %243 = vmatpush1.msra.mxu0 %v195
    %244 = vmatprep.subr.mxu0 0.0
    %245 = vmatpush2.msra.mxu0 0.0
    %246 = vmatprep.subr.mxu0 0.0
    %247 = vmatpush2.msra.mxu0 0.0
    %248 = vmatprep.subr.mxu0 0.0
    %249 = vmatpush2.msra.mxu0 0.0
    %250 = vmatprep.subr.mxu0 0.0
    %251 = vmatpush2.msra.mxu0 0.0
    %252 = vmatprep.subr.mxu0 0.0
    %253 = vmatpush2.msra.mxu0 0.0
    %254 = vmatprep.subr.mxu0 0.0
    %255 = vmatpush2.msra.mxu0 0.0
    %256 = vmatprep.subr.mxu0 0.0
    %257 = vmatpush2.msra.mxu0 0.0
    %258 = vmatprep.subr.mxu0 0.0
    %259 = vmatpush2.msra.mxu0 0.0
    %260 = vmatprep.subr.mxu0 0.0
    %261 = vmatpush2.msra.mxu0 0.0
    %262 = vmatprep.subr.mxu0 0.0
    %263 = vmatpush2.msra.mxu0 0.0
    %264 = vmatprep.subr.mxu0 0.0
    %265 = vmatpush2.msra.mxu0 0.0
    %266 = vmatprep.subr.mxu0 0.0
    %267 = vmatpush2.msra.mxu0 0.0
    %268 = vmatprep.subr.mxu0 0.0
    %269 = vmatpush2.msra.mxu0 0.0
    %270 = vmatprep.subr.mxu0 0.0
    %271 = vmatpush2.msra.mxu0 0.0
    %272 = vmatprep.subr.mxu0 0.0
    %273 = vmatpush2.msra.mxu0 0.0
    %274 = vmatprep.subr.mxu0 0.0
    %275 = vmatpush2.msra.mxu0 0.0
    %276 = vmatprep.mubr.f32.mxu0 0.0
    %277 = vmatmul.mubr.f32.gmra.mxu0 0.0
    %v278 = vpop.f32.mrf.mxu0
    %v279 = vadd.f32 0.0, %v278
    %v280 = vpop.f32.mrf.mxu0
    %281 = vdwg.mxu0
    %v282 = vadd.f32 %v211, %v279
    %v283 = vtanh.pop %v282
    %s284 = scalar_lea.vmem [#allocation2], 8
    %v285 = vld [vmem:[%s284] sm:$0xff]
    %286 = vmatprep.subr.mxu0 0.0
    %287 = vmatpush1.msra.mxu0 %v210
    %288 = vmatprep.subr.mxu0 0.0
    %289 = vmatpush1.msra.mxu0 %v209
    %290 = vmatprep.subr.mxu0 0.0
    %291 = vmatpush1.msra.mxu0 %v208
    %292 = vmatprep.subr.mxu0 0.0
    %293 = vmatpush1.msra.mxu0 %v207
    %294 = vmatprep.subr.mxu0 0.0
    %295 = vmatpush1.msra.mxu0 %v206
    %296 = vmatprep.subr.mxu0 0.0
    %297 = vmatpush1.msra.mxu0 %v205
    %298 = vmatprep.subr.mxu0 0.0
    %299 = vmatpush1.msra.mxu0 %v204
    %300 = vmatprep.subr.mxu0 0.0
    %301 = vmatpush1.msra.mxu0 %v203
    %302 = vmatprep.subr.mxu0 0.0
    %303 = vmatpush1.msra.mxu0 %v202
    %304 = vmatprep.subr.mxu0 0.0
    %305 = vmatpush1.msra.mxu0 %v201
    %306 = vmatprep.subr.mxu0 0.0
    %307 = vmatpush1.msra.mxu0 %v200
    %308 = vmatprep.subr.mxu0 0.0
    %309 = vmatpush1.msra.mxu0 %v199
    %310 = vmatprep.subr.mxu0 0.0
    %311 = vmatpush1.msra.mxu0 %v198
    %312 = vmatprep.subr.mxu0 0.0
    %313 = vmatpush1.msra.mxu0 %v197
    %314 = vmatprep.subr.mxu0 0.0
    %315 = vmatpush1.msra.mxu0 %v196
    %316 = vmatprep.subr.mxu0 0.0
    %317 = vmatpush1.msra.mxu0 %v195
    %318 = vmatprep.subr.mxu0 0.0
    %319 = vmatpush2.msra.mxu0 0.0
    %320 = vmatprep.subr.mxu0 0.0
    %321 = vmatpush2.msra.mxu0 0.0
    %322 = vmatprep.subr.mxu0 0.0
    %323 = vmatpush2.msra.mxu0 0.0
    %324 = vmatprep.subr.mxu0 0.0
    %325 = vmatpush2.msra.mxu0 0.0
    %326 = vmatprep.subr.mxu0 0.0
    %327 = vmatpush2.msra.mxu0 0.0
    %328 = vmatprep.subr.mxu0 0.0
    %329 = vmatpush2.msra.mxu0 0.0
    %330 = vmatprep.subr.mxu0 0.0
    %331 = vmatpush2.msra.mxu0 0.0
    %332 = vmatprep.subr.mxu0 0.0
    %333 = vmatpush2.msra.mxu0 0.0
    %334 = vmatprep.subr.mxu0 0.0
    %335 = vmatpush2.msra.mxu0 0.0
    %336 = vmatprep.subr.mxu0 0.0
    %337 = vmatpush2.msra.mxu0 0.0
    %338 = vmatprep.subr.mxu0 0.0
    %339 = vmatpush2.msra.mxu0 0.0
    %340 = vmatprep.subr.mxu0 0.0
    %341 = vmatpush2.msra.mxu0 0.0
    %342 = vmatprep.subr.mxu0 0.0
    %343 = vmatpush2.msra.mxu0 0.0
    %344 = vmatprep.subr.mxu0 0.0
    %345 = vmatpush2.msra.mxu0 0.0
    %346 = vmatprep.subr.mxu0 0.0
    %347 = vmatpush2.msra.mxu0 0.0
    %348 = vmatprep.subr.mxu0 0.0
    %349 = vmatpush2.msra.mxu0 0.0
    %350 = vmatprep.mubr.f32.mxu0 0.0
    %351 = vmatmul.mubr.f32.gmra.mxu0 %v283
    %v352 = vpop.f32.mrf.mxu0
    %v353 = vadd.f32 0.0, %v352
    %v354 = vpop.f32.mrf.mxu0
    %355 = vdwg.mxu0
    %v356 = vadd.f32 %v285, %v353
    %v357 = vtanh.pop %v356
    %s358 = scalar_lea.vmem [#allocation2], 16
    %v359 = vld [vmem:[%s358] sm:$0xff]
    %360 = vmatprep.subr.mxu0 0.0
    %361 = vmatpush1.msra.mxu0 %v210
    %362 = vmatprep.subr.mxu0 0.0
    %363 = vmatpush1.msra.mxu0 %v209
    %364 = vmatprep.subr.mxu0 0.0
    %365 = vmatpush1.msra.mxu0 %v208
    %366 = vmatprep.subr.mxu0 0.0
    %367 = vmatpush1.msra.mxu0 %v207
    %368 = vmatprep.subr.mxu0 0.0
    %369 = vmatpush1.msra.mxu0 %v206
    %370 = vmatprep.subr.mxu0 0.0
    %371 = vmatpush1.msra.mxu0 %v205
    %372 = vmatprep.subr.mxu0 0.0
    %373 = vmatpush1.msra.mxu0 %v204
    %374 = vmatprep.subr.mxu0 0.0
    %375 = vmatpush1.msra.mxu0 %v203
    %376 = vmatprep.subr.mxu0 0.0
    %377 = vmatpush1.msra.mxu0 %v202
    %378 = vmatprep.subr.mxu0 0.0
    %379 = vmatpush1.msra.mxu0 %v201
    %380 = vmatprep.subr.mxu0 0.0
    %381 = vmatpush1.msra.mxu0 %v200
    %382 = vmatprep.subr.mxu0 0.0
    %383 = vmatpush1.msra.mxu0 %v199
    %384 = vmatprep.subr.mxu0 0.0
    %385 = vmatpush1.msra.mxu0 %v198
    %386 = vmatprep.subr.mxu0 0.0
    %387 = vmatpush1.msra.mxu0 %v197
    %388 = vmatprep.subr.mxu0 0.0
    %389 = vmatpush1.msra.mxu0 %v196
    %390 = vmatprep.subr.mxu0 0.0
    %391 = vmatpush1.msra.mxu0 %v195
    %392 = vmatprep.subr.mxu0 0.0
    %393 = vmatpush2.msra.mxu0 0.0
    %394 = vmatprep.subr.mxu0 0.0
    %395 = vmatpush2.msra.mxu0 0.0
    %396 = vmatprep.subr.mxu0 0.0
    %397 = vmatpush2.msra.mxu0 0.0
    %398 = vmatprep.subr.mxu0 0.0
    %399 = vmatpush2.msra.mxu0 0.0
    %400 = vmatprep.subr.mxu0 0.0
    %401 = vmatpush2.msra.mxu0 0.0
    %402 = vmatprep.subr.mxu0 0.0
    %403 = vmatpush2.msra.mxu0 0.0
    %404 = vmatprep.subr.mxu0 0.0
    %405 = vmatpush2.msra.mxu0 0.0
    %406 = vmatprep.subr.mxu0 0.0
    %407 = vmatpush2.msra.mxu0 0.0
    %408 = vmatprep.subr.mxu0 0.0
    %409 = vmatpush2.msra.mxu0 0.0
    %410 = vmatprep.subr.mxu0 0.0
    %411 = vmatpush2.msra.mxu0 0.0
    %412 = vmatprep.subr.mxu0 0.0
    %413 = vmatpush2.msra.mxu0 0.0
    %414 = vmatprep.subr.mxu0 0.0
    %415 = vmatpush2.msra.mxu0 0.0
    %416 = vmatprep.subr.mxu0 0.0
    %417 = vmatpush2.msra.mxu0 0.0
    %418 = vmatprep.subr.mxu0 0.0
    %419 = vmatpush2.msra.mxu0 0.0
    %420 = vmatprep.subr.mxu0 0.0
    %421 = vmatpush2.msra.mxu0 0.0
    %422 = vmatprep.subr.mxu0 0.0
    %423 = vmatpush2.msra.mxu0 0.0
    %424 = vmatprep.mubr.f32.mxu0 0.0
    %425 = vmatmul.mubr.f32.gmra.mxu0 %v357
    %v426 = vpop.f32.mrf.mxu0
    %v427 = vadd.f32 0.0, %v426
    %v428 = vpop.f32.mrf.mxu0
    %429 = vdwg.mxu0
    %v430 = vadd.f32 %v359, %v427
    %v431 = vtanh.pop %v430
    %s432 = scalar_lea.vmem [#allocation2], 24
    %v433 = vld [vmem:[%s432] sm:$0xff]
    %434 = vmatprep.subr.mxu0 0.0
    %435 = vmatpush1.msra.mxu0 %v210
    %436 = vmatprep.subr.mxu0 0.0
    %437 = vmatpush1.msra.mxu0 %v209
    %438 = vmatprep.subr.mxu0 0.0
    %439 = vmatpush1.msra.mxu0 %v208
    %440 = vmatprep.subr.mxu0 0.0
    %441 = vmatpush1.msra.mxu0 %v207
    %442 = vmatprep.subr.mxu0 0.0
    %443 = vmatpush1.msra.mxu0 %v206
    %444 = vmatprep.subr.mxu0 0.0
    %445 = vmatpush1.msra.mxu0 %v205
    %446 = vmatprep.subr.mxu0 0.0
    %447 = vmatpush1.msra.mxu0 %v204
    %448 = vmatprep.subr.mxu0 0.0
    %449 = vmatpush1.msra.mxu0 %v203
    %450 = vmatprep.subr.mxu0 0.0
    %451 = vmatpush1.msra.mxu0 %v202
    %452 = vmatprep.subr.mxu0 0.0
    %453 = vmatpush1.msra.mxu0 %v201
    %454 = vmatprep.subr.mxu0 0.0
    %455 = vmatpush1.msra.mxu0 %v200
    %456 = vmatprep.subr.mxu0 0.0
    %457 = vmatpush1.msra.mxu0 %v199
    %458 = vmatprep.subr.mxu0 0.0
    %459 = vmatpush1.msra.mxu0 %v198
    %460 = vmatprep.subr.mxu0 0.0
    %461 = vmatpush1.msra.mxu0 %v197
    %462 = vmatprep.subr.mxu0 0.0
    %463 = vmatpush1.msra.mxu0 %v196
    %464 = vmatprep.subr.mxu0 0.0
    %465 = vmatpush1.msra.mxu0 %v195
    %466 = vmatprep.subr.mxu0 0.0
    %467 = vmatpush2.msra.mxu0 0.0
    %468 = vmatprep.subr.mxu0 0.0
    %469 = vmatpush2.msra.mxu0 0.0
    %470 = vmatprep.subr.mxu0 0.0
    %471 = vmatpush2.msra.mxu0 0.0
    %472 = vmatprep.subr.mxu0 0.0
    %473 = vmatpush2.msra.mxu0 0.0
    %474 = vmatprep.subr.mxu0 0.0
    %475 = vmatpush2.msra.mxu0 0.0
    %476 = vmatprep.subr.mxu0 0.0
    %477 = vmatpush2.msra.mxu0 0.0
    %478 = vmatprep.subr.mxu0 0.0
    %479 = vmatpush2.msra.mxu0 0.0
    %480 = vmatprep.subr.mxu0 0.0
    %481 = vmatpush2.msra.mxu0 0.0
    %482 = vmatprep.subr.mxu0 0.0
    %483 = vmatpush2.msra.mxu0 0.0
    %484 = vmatprep.subr.mxu0 0.0
    %485 = vmatpush2.msra.mxu0 0.0
    %486 = vmatprep.subr.mxu0 0.0
    %487 = vmatpush2.msra.mxu0 0.0
    %488 = vmatprep.subr.mxu0 0.0
    %489 = vmatpush2.msra.mxu0 0.0
    %490 = vmatprep.subr.mxu0 0.0
    %491 = vmatpush2.msra.mxu0 0.0
    %492 = vmatprep.subr.mxu0 0.0
    %493 = vmatpush2.msra.mxu0 0.0
    %494 = vmatprep.subr.mxu0 0.0
    %495 = vmatpush2.msra.mxu0 0.0
    %496 = vmatprep.subr.mxu0 0.0
    %497 = vmatpush2.msra.mxu0 0.0
    %498 = vmatprep.mubr.f32.mxu0 0.0
    %499 = vmatmul.mubr.f32.gmra.mxu0 %v431
    %v500 = vpop.f32.mrf.mxu0
    %v501 = vadd.f32 0.0, %v500
    %v502 = vpop.f32.mrf.mxu0
    %503 = vdwg.mxu0
    %v504 = vadd.f32 %v433, %v501
    %v505 = vtanh.pop %v504
    %s506 = scalar_lea.vmem [#allocation2], 32
    %v507 = vld [vmem:[%s506] sm:$0xff]
    %508 = vmatprep.subr.mxu0 0.0
    %509 = vmatpush1.msra.mxu0 %v210
    %510 = vmatprep.subr.mxu0 0.0
    %511 = vmatpush1.msra.mxu0 %v209
    %512 = vmatprep.subr.mxu0 0.0
    %513 = vmatpush1.msra.mxu0 %v208
    %514 = vmatprep.subr.mxu0 0.0
    %515 = vmatpush1.msra.mxu0 %v207
    %516 = vmatprep.subr.mxu0 0.0
    %517 = vmatpush1.msra.mxu0 %v206
    %518 = vmatprep.subr.mxu0 0.0
    %519 = vmatpush1.msra.mxu0 %v205
    %520 = vmatprep.subr.mxu0 0.0
    %521 = vmatpush1.msra.mxu0 %v204
    %522 = vmatprep.subr.mxu0 0.0
    %523 = vmatpush1.msra.mxu0 %v203
    %524 = vmatprep.subr.mxu0 0.0
    %525 = vmatpush1.msra.mxu0 %v202
    %526 = vmatprep.subr.mxu0 0.0
    %527 = vmatpush1.msra.mxu0 %v201
    %528 = vmatprep.subr.mxu0 0.0
    %529 = vmatpush1.msra.mxu0 %v200
    %530 = vmatprep.subr.mxu0 0.0
    %531 = vmatpush1.msra.mxu0 %v199
    %532 = vmatprep.subr.mxu0 0.0
    %533 = vmatpush1.msra.mxu0 %v198
    %534 = vmatprep.subr.mxu0 0.0
    %535 = vmatpush1.msra.mxu0 %v197
    %536 = vmatprep.subr.mxu0 0.0
    %537 = vmatpush1.msra.mxu0 %v196
    %538 = vmatprep.subr.mxu0 0.0
    %539 = vmatpush1.msra.mxu0 %v195
    %540 = vmatprep.subr.mxu0 0.0
    %541 = vmatpush2.msra.mxu0 0.0
    %542 = vmatprep.subr.mxu0 0.0
    %543 = vmatpush2.msra.mxu0 0.0
    %544 = vmatprep.subr.mxu0 0.0
    %545 = vmatpush2.msra.mxu0 0.0
    %546 = vmatprep.subr.mxu0 0.0
    %547 = vmatpush2.msra.mxu0 0.0
    %548 = vmatprep.subr.mxu0 0.0
    %549 = vmatpush2.msra.mxu0 0.0
    %550 = vmatprep.subr.mxu0 0.0
    %551 = vmatpush2.msra.mxu0 0.0
    %552 = vmatprep.subr.mxu0 0.0
    %553 = vmatpush2.msra.mxu0 0.0
    %554 = vmatprep.subr.mxu0 0.0
    %555 = vmatpush2.msra.mxu0 0.0
    %556 = vmatprep.subr.mxu0 0.0
    %557 = vmatpush2.msra.mxu0 0.0
    %558 = vmatprep.subr.mxu0 0.0
    %559 = vmatpush2.msra.mxu0 0.0
    %560 = vmatprep.subr.mxu0 0.0
    %561 = vmatpush2.msra.mxu0 0.0
    %562 = vmatprep.subr.mxu0 0.0
    %563 = vmatpush2.msra.mxu0 0.0
    %564 = vmatprep.subr.mxu0 0.0
    %565 = vmatpush2.msra.mxu0 0.0
    %566 = vmatprep.subr.mxu0 0.0
    %567 = vmatpush2.msra.mxu0 0.0
    %568 = vmatprep.subr.mxu0 0.0
    %569 = vmatpush2.msra.mxu0 0.0
    %570 = vmatprep.subr.mxu0 0.0
    %571 = vmatpush2.msra.mxu0 0.0
    %572 = vmatprep.mubr.f32.mxu0 0.0
    %573 = vmatmul.mubr.f32.gmra.mxu0 %v505
    %v574 = vpop.f32.mrf.mxu0
    %v575 = vadd.f32 0.0, %v574
    %v576 = vpop.f32.mrf.mxu0
    %577 = vdwg.mxu0
    %v578 = vadd.f32 %v507, %v575
    %v579 = vtanh.pop %v578
    %s580 = scalar_lea.vmem [#allocation2], 40
    %v581 = vld [vmem:[%s580] sm:$0xff]
    %582 = vmatprep.subr.mxu0 0.0
    %583 = vmatpush1.msra.mxu0 %v210
    %584 = vmatprep.subr.mxu0 0.0
    %585 = vmatpush1.msra.mxu0 %v209
    %586 = vmatprep.subr.mxu0 0.0
    %587 = vmatpush1.msra.mxu0 %v208
    %588 = vmatprep.subr.mxu0 0.0
    %589 = vmatpush1.msra.mxu0 %v207
    %590 = vmatprep.subr.mxu0 0.0
    %591 = vmatpush1.msra.mxu0 %v206
    %592 = vmatprep.subr.mxu0 0.0
    %593 = vmatpush1.msra.mxu0 %v205
    %594 = vmatprep.subr.mxu0 0.0
    %595 = vmatpush1.msra.mxu0 %v204
    %596 = vmatprep.subr.mxu0 0.0
    %597 = vmatpush1.msra.mxu0 %v203
    %598 = vmatprep.subr.mxu0 0.0
    %599 = vmatpush1.msra.mxu0 %v202
    %600 = vmatprep.subr.mxu0 0.0
    %601 = vmatpush1.msra.mxu0 %v201
    %602 = vmatprep.subr.mxu0 0.0
    %603 = vmatpush1.msra.mxu0 %v200
    %604 = vmatprep.subr.mxu0 0.0
    %605 = vmatpush1.msra.mxu0 %v199
    %606 = vmatprep.subr.mxu0 0.0
    %607 = vmatpush1.msra.mxu0 %v198
    %608 = vmatprep.subr.mxu0 0.0
    %609 = vmatpush1.msra.mxu0 %v197
    %610 = vmatprep.subr.mxu0 0.0
    %611 = vmatpush1.msra.mxu0 %v196
    %612 = vmatprep.subr.mxu0 0.0
    %613 = vmatpush1.msra.mxu0 %v195
    %614 = vmatprep.subr.mxu0 0.0
    %615 = vmatpush2.msra.mxu0 0.0
    %616 = vmatprep.subr.mxu0 0.0
    %617 = vmatpush2.msra.mxu0 0.0
    %618 = vmatprep.subr.mxu0 0.0
    %619 = vmatpush2.msra.mxu0 0.0
    %620 = vmatprep.subr.mxu0 0.0
    %621 = vmatpush2.msra.mxu0 0.0
    %622 = vmatprep.subr.mxu0 0.0
    %623 = vmatpush2.msra.mxu0 0.0
    %624 = vmatprep.subr.mxu0 0.0
    %625 = vmatpush2.msra.mxu0 0.0
    %626 = vmatprep.subr.mxu0 0.0
    %627 = vmatpush2.msra.mxu0 0.0
    %628 = vmatprep.subr.mxu0 0.0
    %629 = vmatpush2.msra.mxu0 0.0
    %630 = vmatprep.subr.mxu0 0.0
    %631 = vmatpush2.msra.mxu0 0.0
    %632 = vmatprep.subr.mxu0 0.0
    %633 = vmatpush2.msra.mxu0 0.0
    %634 = vmatprep.subr.mxu0 0.0
    %635 = vmatpush2.msra.mxu0 0.0
    %636 = vmatprep.subr.mxu0 0.0
    %637 = vmatpush2.msra.mxu0 0.0
    %638 = vmatprep.subr.mxu0 0.0
    %639 = vmatpush2.msra.mxu0 0.0
    %640 = vmatprep.subr.mxu0 0.0
    %641 = vmatpush2.msra.mxu0 0.0
    %642 = vmatprep.subr.mxu0 0.0
    %643 = vmatpush2.msra.mxu0 0.0
    %644 = vmatprep.subr.mxu0 0.0
    %645 = vmatpush2.msra.mxu0 0.0
    %646 = vmatprep.mubr.f32.mxu0 0.0
    %647 = vmatmul.mubr.f32.gmra.mxu0 %v579
    %v648 = vpop.f32.mrf.mxu0
    %v649 = vadd.f32 0.0, %v648
    %v650 = vpop.f32.mrf.mxu0
    %651 = vdwg.mxu0
    %v652 = vadd.f32 %v581, %v649
    %v653 = vtanh.pop %v652
    %s654 = scalar_lea.vmem [#allocation2], 48
    %v655 = vld [vmem:[%s654] sm:$0xff]
    %656 = vmatprep.subr.mxu0 0.0
    %657 = vmatpush1.msra.mxu0 %v210
    %658 = vmatprep.subr.mxu0 0.0
    %659 = vmatpush1.msra.mxu0 %v209
    %660 = vmatprep.subr.mxu0 0.0
    %661 = vmatpush1.msra.mxu0 %v208
    %662 = vmatprep.subr.mxu0 0.0
    %663 = vmatpush1.msra.mxu0 %v207
    %664 = vmatprep.subr.mxu0 0.0
    %665 = vmatpush1.msra.mxu0 %v206
    %666 = vmatprep.subr.mxu0 0.0
    %667 = vmatpush1.msra.mxu0 %v205
    %668 = vmatprep.subr.mxu0 0.0
    %669 = vmatpush1.msra.mxu0 %v204
    %670 = vmatprep.subr.mxu0 0.0
    %671 = vmatpush1.msra.mxu0 %v203
    %672 = vmatprep.subr.mxu0 0.0
    %673 = vmatpush1.msra.mxu0 %v202
    %674 = vmatprep.subr.mxu0 0.0
    %675 = vmatpush1.msra.mxu0 %v201
    %676 = vmatprep.subr.mxu0 0.0
    %677 = vmatpush1.msra.mxu0 %v200
    %678 = vmatprep.subr.mxu0 0.0
    %679 = vmatpush1.msra.mxu0 %v199
    %680 = vmatprep.subr.mxu0 0.0
    %681 = vmatpush1.msra.mxu0 %v198
    %682 = vmatprep.subr.mxu0 0.0
    %683 = vmatpush1.msra.mxu0 %v197
    %684 = vmatprep.subr.mxu0 0.0
    %685 = vmatpush1.msra.mxu0 %v196
    %686 = vmatprep.subr.mxu0 0.0
    %687 = vmatpush1.msra.mxu0 %v195
    %688 = vmatprep.subr.mxu0 0.0
    %689 = vmatpush2.msra.mxu0 0.0
    %690 = vmatprep.subr.mxu0 0.0
    %691 = vmatpush2.msra.mxu0 0.0
    %692 = vmatprep.subr.mxu0 0.0
    %693 = vmatpush2.msra.mxu0 0.0
    %694 = vmatprep.subr.mxu0 0.0
    %695 = vmatpush2.msra.mxu0 0.0
    %696 = vmatprep.subr.mxu0 0.0
    %697 = vmatpush2.msra.mxu0 0.0
    %698 = vmatprep.subr.mxu0 0.0
    %699 = vmatpush2.msra.mxu0 0.0
    %700 = vmatprep.subr.mxu0 0.0
    %701 = vmatpush2.msra.mxu0 0.0
    %702 = vmatprep.subr.mxu0 0.0
    %703 = vmatpush2.msra.mxu0 0.0
    %704 = vmatprep.subr.mxu0 0.0
    %705 = vmatpush2.msra.mxu0 0.0
    %706 = vmatprep.subr.mxu0 0.0
    %707 = vmatpush2.msra.mxu0 0.0
    %708 = vmatprep.subr.mxu0 0.0
    %709 = vmatpush2.msra.mxu0 0.0
    %710 = vmatprep.subr.mxu0 0.0
    %711 = vmatpush2.msra.mxu0 0.0
    %712 = vmatprep.subr.mxu0 0.0
    %713 = vmatpush2.msra.mxu0 0.0
    %714 = vmatprep.subr.mxu0 0.0
    %715 = vmatpush2.msra.mxu0 0.0
    %716 = vmatprep.subr.mxu0 0.0
    %717 = vmatpush2.msra.mxu0 0.0
    %718 = vmatprep.subr.mxu0 0.0
    %719 = vmatpush2.msra.mxu0 0.0
    %720 = vmatprep.mubr.f32.mxu0 0.0
    %721 = vmatmul.mubr.f32.gmra.mxu0 %v653
    %v722 = vpop.f32.mrf.mxu0
    %v723 = vadd.f32 0.0, %v722
    %v724 = vpop.f32.mrf.mxu0
    %725 = vdwg.mxu0
    %v726 = vadd.f32 %v655, %v723
    %v727 = vtanh.pop %v726
    %s728 = scalar_lea.vmem [#allocation2], 56
    %v729 = vld [vmem:[%s728] sm:$0xff]
    %730 = vmatprep.subr.mxu0 0.0
    %731 = vmatpush1.msra.mxu0 %v210
    %732 = vmatprep.subr.mxu0 0.0
    %733 = vmatpush1.msra.mxu0 %v209
    %734 = vmatprep.subr.mxu0 0.0
    %735 = vmatpush1.msra.mxu0 %v208
    %736 = vmatprep.subr.mxu0 0.0
    %737 = vmatpush1.msra.mxu0 %v207
    %738 = vmatprep.subr.mxu0 0.0
    %739 = vmatpush1.msra.mxu0 %v206
    %740 = vmatprep.subr.mxu0 0.0
    %741 = vmatpush1.msra.mxu0 %v205
    %742 = vmatprep.subr.mxu0 0.0
    %743 = vmatpush1.msra.mxu0 %v204
    %744 = vmatprep.subr.mxu0 0.0
    %745 = vmatpush1.msra.mxu0 %v203
    %746 = vmatprep.subr.mxu0 0.0
    %747 = vmatpush1.msra.mxu0 %v202
    %748 = vmatprep.subr.mxu0 0.0
    %749 = vmatpush1.msra.mxu0 %v201
    %750 = vmatprep.subr.mxu0 0.0
    %751 = vmatpush1.msra.mxu0 %v200
    %752 = vmatprep.subr.mxu0 0.0
    %753 = vmatpush1.msra.mxu0 %v199
    %754 = vmatprep.subr.mxu0 0.0
    %755 = vmatpush1.msra.mxu0 %v198
    %756 = vmatprep.subr.mxu0 0.0
    %757 = vmatpush1.msra.mxu0 %v197
    %758 = vmatprep.subr.mxu0 0.0
    %759 = vmatpush1.msra.mxu0 %v196
    %760 = vmatprep.subr.mxu0 0.0
    %761 = vmatpush1.msra.mxu0 %v195
    %762 = vmatprep.subr.mxu0 0.0
    %763 = vmatpush2.msra.mxu0 0.0
    %764 = vmatprep.subr.mxu0 0.0
    %765 = vmatpush2.msra.mxu0 0.0
    %766 = vmatprep.subr.mxu0 0.0
    %767 = vmatpush2.msra.mxu0 0.0
    %768 = vmatprep.subr.mxu0 0.0
    %769 = vmatpush2.msra.mxu0 0.0
    %770 = vmatprep.subr.mxu0 0.0
    %771 = vmatpush2.msra.mxu0 0.0
    %772 = vmatprep.subr.mxu0 0.0
    %773 = vmatpush2.msra.mxu0 0.0
    %774 = vmatprep.subr.mxu0 0.0
    %775 = vmatpush2.msra.mxu0 0.0
    %776 = vmatprep.subr.mxu0 0.0
    %777 = vmatpush2.msra.mxu0 0.0
    %778 = vmatprep.subr.mxu0 0.0
    %779 = vmatpush2.msra.mxu0 0.0
    %780 = vmatprep.subr.mxu0 0.0
    %781 = vmatpush2.msra.mxu0 0.0
    %782 = vmatprep.subr.mxu0 0.0
    %783 = vmatpush2.msra.mxu0 0.0
    %784 = vmatprep.subr.mxu0 0.0
    %785 = vmatpush2.msra.mxu0 0.0
    %786 = vmatprep.subr.mxu0 0.0
    %787 = vmatpush2.msra.mxu0 0.0
    %788 = vmatprep.subr.mxu0 0.0
    %789 = vmatpush2.msra.mxu0 0.0
    %790 = vmatprep.subr.mxu0 0.0
    %791 = vmatpush2.msra.mxu0 0.0
    %792 = vmatprep.subr.mxu0 0.0
    %793 = vmatpush2.msra.mxu0 0.0
    %794 = vmatprep.mubr.f32.mxu0 0.0
    %795 = vmatmul.mubr.f32.gmra.mxu0 %v727
    %v796 = vpop.f32.mrf.mxu0
    %v797 = vadd.f32 0.0, %v796
    %v798 = vpop.f32.mrf.mxu0
    %799 = vdwg.mxu0
    %v800 = vadd.f32 %v729, %v797
    %v801 = vtanh.pop %v800
    %v802 = vld [vmem:[#allocation5] sm:$0xff]
    %v803 = vld [vmem:[#allocation5 + $0x8] sm:$0xff]
    %v804 = vld [vmem:[#allocation5 + $0x10] sm:$0xff]
    %v805 = vld [vmem:[#allocation5 + $0x18] sm:$0xff]
    %v806 = vld [vmem:[#allocation5 + $0x20] sm:$0xff]
    %v807 = vld [vmem:[#allocation5 + $0x28] sm:$0xff]
    %v808 = vld [vmem:[#allocation5 + $0x30] sm:$0xff]
    %v809 = vld [vmem:[#allocation5 + $0x38] sm:$0xff]
    %v810 = vld [vmem:[#allocation5 + $0x40] sm:$0xff]
    %v811 = vld [vmem:[#allocation5 + $0x48] sm:$0xff]
    %v812 = vld [vmem:[#allocation5 + $0x50] sm:$0xff]
    %v813 = vld [vmem:[#allocation5 + $0x58] sm:$0xff]
    %v814 = vld [vmem:[#allocation5 + $0x60] sm:$0xff]
    %v815 = vld [vmem:[#allocation5 + $0x68] sm:$0xff]
    %v816 = vld [vmem:[#allocation5 + $0x70] sm:$0xff]
    %v817 = vld [vmem:[#allocation5 + $0x78] sm:$0xff]
    %v818 = vld [vmem:[%s5] sm:$0x1]
    %v820 = vlaneseq
    %v821 = vshrl.u32 %v820, 7
    %v822 = vsub.s32 0, %v821
    %v823 = vrot.slane %v818, %v822
    %825 = vmatprep.subr.mxu0 0.0
    %826 = vmatpush1.msra.mxu0 %v817
    %827 = vmatprep.subr.mxu0 0.0
    %828 = vmatpush1.msra.mxu0 %v816
    %829 = vmatprep.subr.mxu0 0.0
    %830 = vmatpush1.msra.mxu0 %v815
    %831 = vmatprep.subr.mxu0 0.0
    %832 = vmatpush1.msra.mxu0 %v814
    %833 = vmatprep.subr.mxu0 0.0
    %834 = vmatpush1.msra.mxu0 %v813
    %835 = vmatprep.subr.mxu0 0.0
    %836 = vmatpush1.msra.mxu0 %v812
    %837 = vmatprep.subr.mxu0 0.0
    %838 = vmatpush1.msra.mxu0 %v811
    %839 = vmatprep.subr.mxu0 0.0
    %840 = vmatpush1.msra.mxu0 %v810
    %841 = vmatprep.subr.mxu0 0.0
    %842 = vmatpush1.msra.mxu0 %v809
    %843 = vmatprep.subr.mxu0 0.0
    %844 = vmatpush1.msra.mxu0 %v808
    %845 = vmatprep.subr.mxu0 0.0
    %846 = vmatpush1.msra.mxu0 %v807
    %847 = vmatprep.subr.mxu0 0.0
    %848 = vmatpush1.msra.mxu0 %v806
    %849 = vmatprep.subr.mxu0 0.0
    %850 = vmatpush1.msra.mxu0 %v805
    %851 = vmatprep.subr.mxu0 0.0
    %852 = vmatpush1.msra.mxu0 %v804
    %853 = vmatprep.subr.mxu0 0.0
    %854 = vmatpush1.msra.mxu0 %v803
    %855 = vmatprep.subr.mxu0 0.0
    %856 = vmatpush1.msra.mxu0 %v802
    %857 = vmatprep.subr.mxu0 0.0
    %858 = vmatpush2.msra.mxu0 0.0
    %859 = vmatprep.subr.mxu0 0.0
    %860 = vmatpush2.msra.mxu0 0.0
    %861 = vmatprep.subr.mxu0 0.0
    %862 = vmatpush2.msra.mxu0 0.0
    %863 = vmatprep.subr.mxu0 0.0
    %864 = vmatpush2.msra.mxu0 0.0
    %865 = vmatprep.subr.mxu0 0.0
    %866 = vmatpush2.msra.mxu0 0.0
    %867 = vmatprep.subr.mxu0 0.0
    %868 = vmatpush2.msra.mxu0 0.0
    %869 = vmatprep.subr.mxu0 0.0
    %870 = vmatpush2.msra.mxu0 0.0
    %871 = vmatprep.subr.mxu0 0.0
    %872 = vmatpush2.msra.mxu0 0.0
    %873 = vmatprep.subr.mxu0 0.0
    %874 = vmatpush2.msra.mxu0 0.0
    %875 = vmatprep.subr.mxu0 0.0
    %876 = vmatpush2.msra.mxu0 0.0
    %877 = vmatprep.subr.mxu0 0.0
    %878 = vmatpush2.msra.mxu0 0.0
    %879 = vmatprep.subr.mxu0 0.0
    %880 = vmatpush2.msra.mxu0 0.0
    %881 = vmatprep.subr.mxu0 0.0
    %882 = vmatpush2.msra.mxu0 0.0
    %883 = vmatprep.subr.mxu0 0.0
    %884 = vmatpush2.msra.mxu0 0.0
    %885 = vmatprep.subr.mxu0 0.0
    %886 = vmatpush2.msra.mxu0 0.0
    %887 = vmatprep.subr.mxu0 0.0
    %888 = vmatpush2.msra.mxu0 0.0
    %889 = vmatprep.mubr.f32.mxu0 0.0
    %890 = vmatmul.mubr.f32.gmra.mxu0 %v801
    %v891 = vpop.f32.mrf.mxu0
    %v892 = vadd.f32 %v823, %v891
    %v893 = vpop.f32.mrf.mxu0
    %894 = vdwg.mxu0
    %895 = vst [vmem:[%s6] sm:$0xff] %v892
    // Predicated region
    $region34: #{image_rnn_forward.1} parent=1 // pred_check
      _
    $region35: #{image_rnn_forward.1} parent=1 // pred_check_branch
      %897 = sbr.rel (0) target = $region37
    $region36: #{image_rnn_forward.1} parent=1 // pred_region
      _
    $region37: #{image_rnn_forward.1} parent=1 // pred_fallthru
      _
    // Predicated region
    $region38: #{image_rnn_forward.1} parent=1 // pred_check
      _
    $region39: #{image_rnn_forward.1} parent=1 // pred_check_branch
      %899 = sbr.rel (0) target = $region41
    $region40: #{image_rnn_forward.1} parent=1 // pred_region
      _
    $region41: #{image_rnn_forward.1} parent=1 // pred_fallthru
      _
    %900 = vsyncpa [#allocation4], 1
    %901 = vsyncpa [#allocation6], 1

</llo_original>
